<compile_context>
chip_gen: v7x
topology: tpu7x:2x2x1
jax: 0.10.0
libtpu: 0.0.40
codegen_flags: <defaults>
</compile_context>

<pallas_src>
import functools

import jax
import jax.numpy as jnp
from jax import lax
from jax.experimental import pallas as pl
from jax.experimental.pallas import tpu as pltpu


# ----------------------------------------------------------------------------
# Fused kernel: backbone stand-in + L2 normalize + linear classifier
# ----------------------------------------------------------------------------
def fused_reid_kernel(x_ref, w_ref, b_ref, fcw_ref, fcb_ref,
                      scores_ref, nfeat_ref, acc_ref, *, inv_hw):
    # x_ref:      (TM, PT, C_pad)   pixel tile; pixels on sublanes, channels on lanes
    # w_ref:      (C_pad, F)        1x1 conv weight, features on lanes
    # b_ref:      (1, F)            conv bias row
    # fcw_ref:    (F, CLS_PAD)      classifier weight, zero-padded to 128 lanes
    # fcb_ref:    (1, CLS_PAD)      classifier bias,   zero-padded to 128 lanes
    # scores_ref: (1, TM, CLS_PAD)  per-block class scores (padded, lane-dense)
    # nfeat_ref:  (1, TM, F)        per-block normalized features (lane-dense)
    # acc_ref:    (TM, F)           row-layout VMEM accumulator of ReLU(conv) sums
    pix = pl.program_id(1)

    @pl.when(pix == 0)
    def _init():
        acc_ref[...] = jnp.zeros_like(acc_ref)

    tm, pt, c_pad = x_ref.shape
    f = acc_ref.shape[1]

    # ---- backbone stand-in: 1x1 conv on the MXU + bias + ReLU + partial GAP.
    x2 = x_ref[...].reshape(tm * pt, c_pad)                 # free leading-dim merge
    y = jnp.dot(x2, w_ref[...], preferred_element_type=jnp.float32)   # (TM*PT, F)
    y = jnp.maximum(y + b_ref[...], 0.0)                    # bias + ReLU
    acc_ref[...] += jnp.sum(y.reshape(tm, pt, f), axis=1)   # per-image pixel sums

    # ---- head: finalize GAP, L2 normalize, classify (once per batch block).
    @pl.when(pix == pl.num_programs(1) - 1)
    def _finalize():
        feat = acc_ref[...] * inv_hw                         # (TM, F) global avg pool
        # F.normalize semantics: x / max(||x||_2, 1e-12)
        sumsq = jnp.sum(feat * feat, axis=1, keepdims=True)  # (TM, 1) lane reduce
        inv_norm = lax.rsqrt(jnp.maximum(sumsq, 1e-24))      # EUP rsqrt
        nf = feat * inv_norm                                 # (TM, F)
        nfeat_ref[...] = nf[None]                            # lane-dense (1, TM, F)
        scores = jnp.dot(nf, fcw_ref[...],
                         preferred_element_type=jnp.float32) + fcb_ref[...]
        scores_ref[...] = scores[None]                       # (1, TM, CLS_PAD)


# ----------------------------------------------------------------------------
# Wrapper
# ----------------------------------------------------------------------------
def simple_reid_forward(x_nchw, params, *, batch_tile=8, pixel_tile=None,
                        lane_pad=128):
    n, c, h, w = x_nchw.shape
    p = h * w
    feat_dim = params["bb_w"].shape[0]
    num_classes = params["fc_w"].shape[1]
    cls_pad = pl.cdiv(num_classes, lane_pad) * lane_pad
    c_pad = max(8, pl.cdiv(c, 8) * 8)

    # Pixel tiling: default = whole image (fewest grid steps; per-step overhead is
    # the dominant cost at these sizes and VMEM has >100x headroom).
    pt = p if pixel_tile is None else int(pixel_tile)
    if pt >= p or p % pt != 0 or pt % 8 != 0:
        pt = p

    # Batch blocking: TM images per grid step, but keep the "parallel" batch axis
    # at >= 2 grid steps when N >= 2 so both v7x TensorCores get work.
    tm = max(1, min(batch_tile, n))
    if p % 8 != 0:
        tm = 1  # keep the in-kernel leading-dim merge trivially layout-free
    while tm > 1 and pl.cdiv(n, tm) < 2:
        tm //= 2
    n_blocks = pl.cdiv(n, tm)
    n_pad = n_blocks * tm

    # Layout plumbing (wrapper-side, tiny): NCHW -> (N, HW, C_pad) so features sit on
    # the lane axis all the way through the kernel; pad batch / channels / classes.
    x_npc = jnp.transpose(x_nchw.reshape(n, c, p), (0, 2, 1))
    x_npc = jnp.pad(x_npc, ((0, n_pad - n), (0, 0), (0, c_pad - c)))
    w_cf = jnp.pad(params["bb_w"].T, ((0, c_pad - c), (0, 0)))          # (C_pad, F)
    b_row = params["bb_b"].reshape(1, feat_dim)                         # (1, F)
    fcw = jnp.pad(params["fc_w"], ((0, 0), (0, cls_pad - num_classes)))
    fcb = jnp.pad(params["fc_b"].reshape(1, num_classes),
                  ((0, 0), (0, cls_pad - num_classes)))

    kernel = functools.partial(fused_reid_kernel, inv_hw=1.0 / float(p))

    scores_pad, nfeat = pl.pallas_call(
        kernel,
        grid=(n_blocks, p // pt),
        in_specs=[
            pl.BlockSpec((tm, pt, c_pad), lambda i, j: (i, j, 0)),
            pl.BlockSpec((c_pad, feat_dim), lambda i, j: (0, 0)),
            pl.BlockSpec((1, feat_dim), lambda i, j: (0, 0)),
            pl.BlockSpec((feat_dim, cls_pad), lambda i, j: (0, 0)),
            pl.BlockSpec((1, cls_pad), lambda i, j: (0, 0)),
        ],
        out_specs=[
            pl.BlockSpec((1, tm, cls_pad), lambda i, j: (i, 0, 0)),
            pl.BlockSpec((1, tm, feat_dim), lambda i, j: (i, 0, 0)),
        ],
        out_shape=(
            jax.ShapeDtypeStruct((n_blocks, tm, cls_pad), jnp.float32),
            jax.ShapeDtypeStruct((n_blocks, tm, feat_dim), jnp.float32),
        ),
        scratch_shapes=[pltpu.VMEM((tm, feat_dim), jnp.float32)],
        compiler_params=pltpu.CompilerParams(
            dimension_semantics=("parallel", "arbitrary")),
    )(x_npc, w_cf, b_row, fcw, fcb)

    class_scores = scores_pad.reshape(n_pad, cls_pad)[:n, :num_classes]
    normalized_features = nfeat.reshape(n_pad, feat_dim)[:n, :]
    return class_scores, normalized_features


# ----------------------------------------------------------------------------
# Example run + pure-JAX reference check
# ----------------------------------------------------------------------------
if __name__ == "__main__":
    N, C, H, W = 2, 3, 16, 16            # NCHW image input (RGB)
    FEATURE_DIM = 128                    # cfg.SOLVER.FEATURE_DIMENSION (small-scale)
    NUM_CLASSES = 16                     # cfg.DATASETS.NUMBER_OF_CLASSES (small-scale)

    key = jax.random.PRNGKey(0)
    k_x, k_bbw, k_bbb, k_fcw = jax.random.split(key, 4)

    x = jax.random.normal(k_x, (N, C, H, W), dtype=jnp.float32)

    params = {
        # deterministic backbone stand-in weights (PyTorch conv layout: (out_ch, in_ch))
        "bb_w": jax.random.normal(k_bbw, (FEATURE_DIM, C), dtype=jnp.float32) * 0.1,
        "bb_b": jax.random.normal(k_bbb, (FEATURE_DIM, 1), dtype=jnp.float32) * 0.01,
        # weights_init_classifier: normal(std=0.001), bias = 0 (math layout (F, classes))
        "fc_w": jax.random.normal(k_fcw, (FEATURE_DIM, NUM_CLASSES),
                                  dtype=jnp.float32) * 0.001,
        "fc_b": jnp.zeros((1, NUM_CLASSES), dtype=jnp.float32),
    }

    class_scores, normalized_features = jax.jit(simple_reid_forward)(x, params)
    jax.block_until_ready((class_scores, normalized_features))

    assert class_scores.shape == (N, NUM_CLASSES)
    assert normalized_features.shape == (N, FEATURE_DIM)

    # Pure-JAX reference of the same stand-in math (conv1x1 + ReLU + GAP + head).
    xr = x.reshape(N, C, H * W)
    y_ref = jnp.maximum(
        jnp.einsum("fc,ncp->nfp", params["bb_w"], xr) + params["bb_b"][None], 0.0)
    feat_ref = jnp.mean(y_ref, axis=2)                                   # (N, F)
    norm_ref = jnp.maximum(
        jnp.sqrt(jnp.sum(feat_ref * feat_ref, axis=1, keepdims=True)), 1e-12)
    nfeat_expected = feat_ref / norm_ref
    scores_expected = nfeat_expected @ params["fc_w"] + params["fc_b"]

    assert jnp.allclose(normalized_features, nfeat_expected, rtol=1e-4, atol=1e-5)
    assert jnp.allclose(class_scores, scores_expected, rtol=1e-4, atol=1e-5)

    print("KERNEL_OK")
</pallas_src>

<mosaic_0001>
module attributes {stable_mosaic.version = 11 : i64} {
  func.func @fused_reid_kernel(%arg0: i32, %arg1: i32, %arg2: memref<1x256x8xf32, #tpu.memory_space<vmem>>, %arg3: memref<8x128xf32, #tpu.memory_space<vmem>>, %arg4: memref<1x128xf32, #tpu.memory_space<vmem>>, %arg5: memref<128x128xf32, #tpu.memory_space<vmem>>, %arg6: memref<1x128xf32, #tpu.memory_space<vmem>>, %arg7: memref<1x1x128xf32, #tpu.memory_space<vmem>>, %arg8: memref<1x1x128xf32, #tpu.memory_space<vmem>>, %arg9: memref<1x128xf32, #tpu.memory_space<vmem>>) attributes {dimension_semantics = [#tpu.dimension_semantics<parallel>, #tpu.dimension_semantics<arbitrary>], iteration_bounds = array<i64: 2, 1>, scalar_prefetch = 0 : i64, scratch_operands = 1 : i64, tpu.core_type = #tpu.core_type<tc>, window_params = [{transform_indices = @transform_0, window_bounds = array<i64: 1, 256, 8>}, {pipeline_mode = #tpu.pipeline_mode<synchronous>, transform_indices = @transform_1, window_bounds = array<i64: 8, 128>}, {pipeline_mode = #tpu.pipeline_mode<synchronous>, transform_indices = @transform_2, window_bounds = array<i64: 1, 128>}, {pipeline_mode = #tpu.pipeline_mode<synchronous>, transform_indices = @transform_3, window_bounds = array<i64: 128, 128>}, {pipeline_mode = #tpu.pipeline_mode<synchronous>, transform_indices = @transform_4, window_bounds = array<i64: 1, 128>}, {transform_indices = @transform_5, window_bounds = array<i64: 1, 1, 128>}, {transform_indices = @transform_6, window_bounds = array<i64: 1, 1, 128>}]} {
    %c0_i32 = arith.constant 0 : i32
    %0 = arith.cmpi eq, %arg1, %c0_i32 : i32
    %1 = arith.extui %0 : i1 to i32
    %c0_i32_0 = arith.constant 0 : i32
    %2 = arith.cmpi ne, %1, %c0_i32_0 : i32
    scf.if %2 {
      %cst_15 = arith.constant 0.000000e+00 : f32
      %20 = vector.broadcast %cst_15 : f32 to vector<1x128xf32>
      %c0_16 = arith.constant 0 : index
      %c0_17 = arith.constant 0 : index
      %21 = vector.load %arg9[%c0_16, %c0_17] : memref<1x128xf32, #tpu.memory_space<vmem>>, vector<1x128xf32>
      tpu.vector_store %arg9[%c0_16, %c0_17], %20 {strides = array<i32>} : memref<1x128xf32, #tpu.memory_space<vmem>>, vector<1x128xf32>,
    } else {
    }
    %c0 = arith.constant 0 : index
    %c0_1 = arith.constant 0 : index
    %c0_2 = arith.constant 0 : index
    %3 = vector.load %arg2[%c0, %c0_1, %c0_2] : memref<1x256x8xf32, #tpu.memory_space<vmem>>, vector<1x256x8xf32>
    %4 = vector.shape_cast %3 : vector<1x256x8xf32> to vector<256x8xf32>
    %c0_3 = arith.constant 0 : index
    %c0_4 = arith.constant 0 : index
    %5 = vector.load %arg3[%c0_3, %c0_4] : memref<8x128xf32, #tpu.memory_space<vmem>>, vector<8x128xf32>
    %cst = arith.constant dense<0.000000e+00> : vector<256x128xf32>
    %6 = tpu.matmul %4, %5, %cst {dimension_numbers = #tpu.dot_dimension_numbers<[1], [0], [0], [1], [0, 0, 1, 1], [], []>} : vector<256x8xf32>, vector<8x128xf32>, vector<256x128xf32> -> vector<256x128xf32>
    %c0_5 = arith.constant 0 : index
    %c0_6 = arith.constant 0 : index
    %7 = vector.load %arg4[%c0_5, %c0_6] : memref<1x128xf32, #tpu.memory_space<vmem>>, vector<1x128xf32>
    %8 = vector.broadcast %7 : vector<1x128xf32> to vector<256x128xf32>
    %9 = arith.addf %6, %8 : vector<256x128xf32>
    %cst_7 = arith.constant 0.000000e+00 : f32
    %10 = vector.broadcast %cst_7 : f32 to vector<256x128xf32>
    %11 = arith.maximumf %9, %10 : vector<256x128xf32>
    %c0_8 = arith.constant 0 : index
    %c0_9 = arith.constant 0 : index
    %12 = vector.load %arg9[%c0_8, %c0_9] : memref<1x128xf32, #tpu.memory_space<vmem>>, vector<1x128xf32>
    %13 = vector.shape_cast %11 : vector<256x128xf32> to vector<1x256x128xf32>
    %cst_10 = arith.constant dense<0.000000e+00> : vector<1x128xf32>
    %14 = vector.multi_reduction <add>, %13, %cst_10 [1] : vector<1x256x128xf32> to vector<1x128xf32>
    %15 = arith.addf %12, %14 : vector<1x128xf32>
    %c0_11 = arith.constant 0 : index
    %c0_12 = arith.constant 0 : index
    %16 = vector.load %arg9[%c0_11, %c0_12] : memref<1x128xf32, #tpu.memory_space<vmem>>, vector<1x128xf32>
    tpu.vector_store %arg9[%c0_11, %c0_12], %15 {strides = array<i32>} : memref<1x128xf32, #tpu.memory_space<vmem>>, vector<1x128xf32>,
    %c0_i32_13 = arith.constant 0 : i32
    %17 = arith.cmpi eq, %arg1, %c0_i32_13 : i32
    %18 = arith.extui %17 : i1 to i32
    %c0_i32_14 = arith.constant 0 : i32
    %19 = arith.cmpi ne, %18, %c0_i32_14 : i32
    scf.if %19 {
      %c0_15 = arith.constant 0 : index
      %c0_16 = arith.constant 0 : index
      %20 = vector.load %arg9[%c0_15, %c0_16] : memref<1x128xf32, #tpu.memory_space<vmem>>, vector<1x128xf32>
      %cst_17 = arith.constant 3.906250e-03 : f32
      %21 = vector.broadcast %cst_17 : f32 to vector<1x128xf32>
      %22 = arith.mulf %20, %21 : vector<1x128xf32>
      %23 = arith.mulf %22, %22 : vector<1x128xf32>
      %cst_18 = arith.constant dense<0.000000e+00> : vector<1xf32>
      %24 = vector.multi_reduction <add>, %23, %cst_18 [1] : vector<1x128xf32> to vector<1xf32>
      %25 = vector.shape_cast %24 : vector<1xf32> to vector<1x1xf32>
      %cst_19 = arith.constant 1.000000e-24 : f32
      %26 = vector.broadcast %cst_19 : f32 to vector<1x1xf32>
      %27 = arith.maximumf %25, %26 : vector<1x1xf32>
      %28 = math.rsqrt %27 : vector<1x1xf32>
      %29 = vector.broadcast %28 : vector<1x1xf32> to vector<1x128xf32>
      %30 = arith.mulf %22, %29 : vector<1x128xf32>
      %31 = vector.shape_cast %30 : vector<1x128xf32> to vector<1x1x128xf32>
      %c0_20 = arith.constant 0 : index
      %c0_21 = arith.constant 0 : index
      %c0_22 = arith.constant 0 : index
      %32 = vector.load %arg8[%c0_20, %c0_21, %c0_22] : memref<1x1x128xf32, #tpu.memory_space<vmem>>, vector<1x1x128xf32>
      tpu.vector_store %arg8[%c0_20, %c0_21, %c0_22], %31 {strides = array<i32>} : memref<1x1x128xf32, #tpu.memory_space<vmem>>, vector<1x1x128xf32>,
      %c0_23 = arith.constant 0 : index
      %c0_24 = arith.constant 0 : index
      %33 = vector.load %arg5[%c0_23, %c0_24] : memref<128x128xf32, #tpu.memory_space<vmem>>, vector<128x128xf32>
      %cst_25 = arith.constant dense<0.000000e+00> : vector<1x128xf32>
      %34 = tpu.matmul %30, %33, %cst_25 {dimension_numbers = #tpu.dot_dimension_numbers<[1], [0], [0], [1], [0, 0, 1, 1], [], []>} : vector<1x128xf32>, vector<128x128xf32>, vector<1x128xf32> -> vector<1x128xf32>
      %c0_26 = arith.constant 0 : index
      %c0_27 = arith.constant 0 : index
      %35 = vector.load %arg6[%c0_26, %c0_27] : memref<1x128xf32, #tpu.memory_space<vmem>>, vector<1x128xf32>
      %36 = arith.addf %34, %35 : vector<1x128xf32>
      %37 = vector.shape_cast %36 : vector<1x128xf32> to vector<1x1x128xf32>
      %c0_28 = arith.constant 0 : index
      %c0_29 = arith.constant 0 : index
      %c0_30 = arith.constant 0 : index
      %38 = vector.load %arg7[%c0_28, %c0_29, %c0_30] : memref<1x1x128xf32, #tpu.memory_space<vmem>>, vector<1x1x128xf32>
      tpu.vector_store %arg7[%c0_28, %c0_29, %c0_30], %37 {strides = array<i32>} : memref<1x1x128xf32, #tpu.memory_space<vmem>>, vector<1x1x128xf32>,
    } else {
    }
    return
  }
  func.func @transform_0(%arg0: i32, %arg1: i32) -> (i32, i32, i32) {
    %c0_i32 = arith.constant 0 : i32
    %c0_i32_0 = arith.constant 0 : i32
    return %arg0, %arg1, %c0_i32 : i32, i32, i32
  }
  func.func @transform_1(%arg0: i32, %arg1: i32) -> (i32, i32) {
    %c0_i32 = arith.constant 0 : i32
    %c0_i32_0 = arith.constant 0 : i32
    %c0_i32_1 = arith.constant 0 : i32
    return %c0_i32, %c0_i32_0 : i32, i32
  }
  func.func @transform_2(%arg0: i32, %arg1: i32) -> (i32, i32) {
    %c0_i32 = arith.constant 0 : i32
    %c0_i32_0 = arith.constant 0 : i32
    %c0_i32_1 = arith.constant 0 : i32
    return %c0_i32, %c0_i32_0 : i32, i32
  }
  func.func @transform_3(%arg0: i32, %arg1: i32) -> (i32, i32) {
    %c0_i32 = arith.constant 0 : i32
    %c0_i32_0 = arith.constant 0 : i32
    %c0_i32_1 = arith.constant 0 : i32
    return %c0_i32, %c0_i32_0 : i32, i32
  }
  func.func @transform_4(%arg0: i32, %arg1: i32) -> (i32, i32) {
    %c0_i32 = arith.constant 0 : i32
    %c0_i32_0 = arith.constant 0 : i32
    %c0_i32_1 = arith.constant 0 : i32
    return %c0_i32, %c0_i32_0 : i32, i32
  }
  func.func @transform_5(%arg0: i32, %arg1: i32) -> (i32, i32, i32) {
    %c0_i32 = arith.constant 0 : i32
    %c0_i32_0 = arith.constant 0 : i32
    %c0_i32_1 = arith.constant 0 : i32
    return %arg0, %c0_i32, %c0_i32_0 : i32, i32, i32
  }
  func.func @transform_6(%arg0: i32, %arg1: i32) -> (i32, i32, i32) {
    %c0_i32 = arith.constant 0 : i32
    %c0_i32_0 = arith.constant 0 : i32
    %c0_i32_1 = arith.constant 0 : i32
    return %arg0, %c0_i32, %c0_i32_0 : i32, i32, i32
  }
}

</mosaic_0001>

<llo_original>
// kernel: simple_reid_forward.1
$region0: #{simple_reid_forward.1}
  #allocation0 [shape = 'u32[]', space=smem, size = 0x4, offset = 0x4, fixed_abs, tag = 'smem constant byte address 0x4 - core index']
  #allocation1 [shape = 'u32[144,128]{1,0:T(1,128)}', space=vmem, size = 0x12000, scoped, tag = 'internal scratch']
  #allocation2 [shape = 'f32[1,128]{1,0:T(1,128)}', space=vmem, size = 0x200, scoped, tag = 'scratch operand']
  %s0 = inlined_call_operand.vmem [shape: f32[2,256,8], index: 0, kind: input, shape index: {}]
  %s1 = inlined_call_operand.vmem [shape: f32[8,128], index: 1, kind: input, shape index: {}]
  %s2 = inlined_call_operand.vmem [shape: f32[1,128], index: 2, kind: input, shape index: {}]
  %s3 = inlined_call_operand.vmem [shape: f32[128,128], index: 3, kind: input, shape index: {}]
  %s4 = inlined_call_operand.vmem [shape: f32[1,128], index: 4, kind: input, shape index: {}]
  %s5 = inlined_call_operand.hbm [shape: f32[2,1,128], index: 5, kind: output, shape index: {0}]
  %s6 = inlined_call_operand.hbm [shape: f32[2,1,128], index: 6, kind: output, shape index: {1}]
  %7 = xla_tuple %s5, %s6
  %s8 = sld [smem:[#allocation0]]
  $region69: #{simple_reid_forward.1} parent=0
    _
  %s10 = ssub.s32 1, %s8
  %s11 = scalar_select 0, %s10, %s8
  $region1: #{simple_reid_forward.1} parent=0
    #allocation3 [shape = 'u8[1024]{0}', space=vmem, size = 0x400, scoped, tag = 'output window, operand 0']
    #allocation4 [shape = 's32[2]{0}', space=sflag, size = 0x8, scoped, tag = 'scoped memory for simple_reid_forward.1']
    #allocation5 [shape = 'u8[1024]{0}', space=vmem, size = 0x400, scoped, tag = 'output window, operand 1']
    #allocation6 [shape = 's32[2]{0}', space=sflag, size = 0x8, scoped, tag = 'scoped memory for simple_reid_forward.1']
    %12 = vsyncpa [#allocation4], 0
    %s13 = scalar_lea.sflag [#allocation4], 1
    %14 = vsyncpa %s13, 0
    %15 = vsyncpa [#allocation6], 0
    %s16 = scalar_lea.sflag [#allocation6], 1
    %17 = vsyncpa %s16, 0
    loop: start=0, step=1, limit=4
    $region2: #{simple_reid_forward.1} parent=1 // loop_pre_header
      _
    $region3: #{simple_reid_forward.1} parent=1 // loop_header
      %s19 = sphi 0, %s23
      %p20 = scmp.ge.s32.totalorder %s19, 4
      %s26 = sphi 0, %s38
      %s27 = sphi 0, %s34
      %s28 = sphi 0, %s26
      %s29 = sphi 0, %s27
      %s30 = sphi 0, %s28
      %s31 = sphi 0, %s29
      %s43 = sphi 0, %s45
      %s46 = sphi 0, %s43
      %s47 = sphi 0, %s46
      %s63 = sphi 0, %s47
      %s67 = sphi 0, %s67
      %s69 = sphi 0, %s67
      %s70 = sphi 0, %s69
      %s84 = sphi 0, %s70
      %s88 = sphi 0, %s88
      %s90 = sphi 0, %s88
      %s91 = sphi 0, %s90
      %s105 = sphi 0, %s91
      %s109 = sphi 0, %s109
      %s111 = sphi 0, %s109
      %s112 = sphi 0, %s111
      %s126 = sphi 0, %s112
      %s130 = sphi 0, %s130
      %s132 = sphi 0, %s130
      %s133 = sphi 0, %s132
      %s147 = sphi 0, %s133
      %s153 = sphi 0, %s155
      %s156 = sphi 0, %s153
      %s157 = sphi 0, %s156
      %s173 = sphi 0, %s157
      %s179 = sphi 0, %s181
      %s182 = sphi 0, %s179
      %s183 = sphi 0, %s182
      %s199 = sphi 0, %s183
    $region4: #{simple_reid_forward.1} parent=1 // loop_header_branch
      %22 = sbr.rel (%p20) target = $region8
    $region5: #{simple_reid_forward.1} parent=1 // loop_body
      %s24 = ssub.s32 %s19, 1
      %s25 = ssub.s32 %s19, 2
      %s32 = sadd.s32 1, %s27
      %p33 = scmp.ge.s32.totalorder %s32, 1
      %s34 = scalar_select %p33, 0, %s32
      %s35 = sadd.s32 1, %s26
      %s36 = scalar_select %p33, %s35, %s26
      %p37 = scmp.ge.s32.totalorder %s36, 2
      %s38 = scalar_select %p37, 0, %s36
      %s39 = ssub.s32 %s26, %s38
      %s40 = ssub.s32 %s27, %s34
      %s41 = sor.u32 %s39, %s40
      %p42 = scmp.eq.s32.totalorder %s41, 0
      %s44 = sadd.s32 %s43, 1
      %s45 = scalar_select %p42, %s43, %s44
      %p48 = pneg %p42
      %p49 = scmp.eq.s32.totalorder %s19, 1
      %p50 = por %p48, %p49
      %p51 = scmp.ne.s32.totalorder %s43, %s46
      %p52 = scmp.eq.s32.totalorder %s19, 0
      %p53 = por %p51, %p52
      %p54 = scmp.ne.s32.totalorder %s43, %s46
      %p55 = scmp.eq.s32.totalorder %s24, 1
      %p56 = por %p54, %p55
      %p57 = scmp.ne.s32.totalorder %s46, %s47
      %p58 = scmp.eq.s32.totalorder %s24, 0
      %p59 = por %p57, %p58
      %p60 = scmp.ne.s32.totalorder %s46, %s47
      %p61 = scmp.eq.s32.totalorder %s25, 1
      %p62 = por %p60, %p61
      %p64 = scmp.ne.s32.totalorder %s47, %s63
      %p65 = scmp.eq.s32.totalorder %s25, 0
      %p66 = por %p64, %p65
      %s68 = sadd.s32 %s67, 1
      %p71 = scmp.eq.s32.totalorder %s19, 1
      %p72 = scmp.ne.s32.totalorder %s67, %s69
      %p73 = scmp.eq.s32.totalorder %s19, 0
      %p74 = por %p72, %p73
      %p75 = scmp.ne.s32.totalorder %s67, %s69
      %p76 = scmp.eq.s32.totalorder %s24, 1
      %p77 = por %p75, %p76
      %p78 = scmp.ne.s32.totalorder %s69, %s70
      %p79 = scmp.eq.s32.totalorder %s24, 0
      %p80 = por %p78, %p79
      %p81 = scmp.ne.s32.totalorder %s69, %s70
      %p82 = scmp.eq.s32.totalorder %s25, 1
      %p83 = por %p81, %p82
      %p85 = scmp.ne.s32.totalorder %s70, %s84
      %p86 = scmp.eq.s32.totalorder %s25, 0
      %p87 = por %p85, %p86
      %s89 = sadd.s32 %s88, 1
      %p92 = scmp.eq.s32.totalorder %s19, 1
      %p93 = scmp.ne.s32.totalorder %s88, %s90
      %p94 = scmp.eq.s32.totalorder %s19, 0
      %p95 = por %p93, %p94
      %p96 = scmp.ne.s32.totalorder %s88, %s90
      %p97 = scmp.eq.s32.totalorder %s24, 1
      %p98 = por %p96, %p97
      %p99 = scmp.ne.s32.totalorder %s90, %s91
      %p100 = scmp.eq.s32.totalorder %s24, 0
      %p101 = por %p99, %p100
      %p102 = scmp.ne.s32.totalorder %s90, %s91
      %p103 = scmp.eq.s32.totalorder %s25, 1
      %p104 = por %p102, %p103
      %p106 = scmp.ne.s32.totalorder %s91, %s105
      %p107 = scmp.eq.s32.totalorder %s25, 0
      %p108 = por %p106, %p107
      %s110 = sadd.s32 %s109, 1
      %p113 = scmp.eq.s32.totalorder %s19, 1
      %p114 = scmp.ne.s32.totalorder %s109, %s111
      %p115 = scmp.eq.s32.totalorder %s19, 0
      %p116 = por %p114, %p115
      %p117 = scmp.ne.s32.totalorder %s109, %s111
      %p118 = scmp.eq.s32.totalorder %s24, 1
      %p119 = por %p117, %p118
      %p120 = scmp.ne.s32.totalorder %s111, %s112
      %p121 = scmp.eq.s32.totalorder %s24, 0
      %p122 = por %p120, %p121
      %p123 = scmp.ne.s32.totalorder %s111, %s112
      %p124 = scmp.eq.s32.totalorder %s25, 1
      %p125 = por %p123, %p124
      %p127 = scmp.ne.s32.totalorder %s112, %s126
      %p128 = scmp.eq.s32.totalorder %s25, 0
      %p129 = por %p127, %p128
      %s131 = sadd.s32 %s130, 1
      %p134 = scmp.eq.s32.totalorder %s19, 1
      %p135 = scmp.ne.s32.totalorder %s130, %s132
      %p136 = scmp.eq.s32.totalorder %s19, 0
      %p137 = por %p135, %p136
      %p138 = scmp.ne.s32.totalorder %s130, %s132
      %p139 = scmp.eq.s32.totalorder %s24, 1
      %p140 = por %p138, %p139
      %p141 = scmp.ne.s32.totalorder %s132, %s133
      %p142 = scmp.eq.s32.totalorder %s24, 0
      %p143 = por %p141, %p142
      %p144 = scmp.ne.s32.totalorder %s132, %s133
      %p145 = scmp.eq.s32.totalorder %s25, 1
      %p146 = por %p144, %p145
      %p148 = scmp.ne.s32.totalorder %s133, %s147
      %p149 = scmp.eq.s32.totalorder %s25, 0
      %p150 = por %p148, %p149
      %s151 = ssub.s32 %s26, %s38
      %p152 = scmp.eq.s32.totalorder %s151, 0
      %s154 = sadd.s32 %s153, 1
      %s155 = scalar_select %p152, %s153, %s154
      %p158 = pneg %p152
      %p159 = scmp.eq.s32.totalorder %s19, 1
      %p160 = por %p158, %p159
      %p161 = scmp.ne.s32.totalorder %s153, %s156
      %p162 = scmp.eq.s32.totalorder %s19, 0
      %p163 = por %p161, %p162
      %p164 = scmp.ne.s32.totalorder %s153, %s156
      %p165 = scmp.eq.s32.totalorder %s24, 1
      %p166 = por %p164, %p165
      %p167 = scmp.ne.s32.totalorder %s156, %s157
      %p168 = scmp.eq.s32.totalorder %s24, 0
      %p169 = por %p167, %p168
      %p170 = scmp.ne.s32.totalorder %s156, %s157
      %p171 = scmp.eq.s32.totalorder %s25, 1
      %p172 = por %p170, %p171
      %p174 = scmp.ne.s32.totalorder %s157, %s173
      %p175 = scmp.eq.s32.totalorder %s25, 0
      %p176 = por %p174, %p175
      %s177 = ssub.s32 %s26, %s38
      %p178 = scmp.eq.s32.totalorder %s177, 0
      %s180 = sadd.s32 %s179, 1
      %s181 = scalar_select %p178, %s179, %s180
      %p184 = pneg %p178
      %p185 = scmp.eq.s32.totalorder %s19, 1
      %p186 = por %p184, %p185
      %p187 = scmp.ne.s32.totalorder %s179, %s182
      %p188 = scmp.eq.s32.totalorder %s19, 0
      %p189 = por %p187, %p188
      %p190 = scmp.ne.s32.totalorder %s179, %s182
      %p191 = scmp.eq.s32.totalorder %s24, 1
      %p192 = por %p190, %p191
      %p193 = scmp.ne.s32.totalorder %s182, %s183
      %p194 = scmp.eq.s32.totalorder %s24, 0
      %p195 = por %p193, %p194
      %p196 = scmp.ne.s32.totalorder %s182, %s183
      %p197 = scmp.eq.s32.totalorder %s25, 1
      %p198 = por %p196, %p197
      %p200 = scmp.ne.s32.totalorder %s183, %s199
      %p201 = scmp.eq.s32.totalorder %s25, 0
      %p202 = por %p200, %p201
      %p203 = scmp.le.s32.totalorder 1, %s19
      %p204 = scmp.lt.s32.totalorder %s19, 3
      %p205 = pnand %p203, %p204
      %p206 = pneg %p205
      // Predicated region
      $region9: #{simple_reid_forward.1} parent=5 // pred_check
        _
      $region10: #{simple_reid_forward.1} parent=5 // pred_check_branch
        %208 = sbr.rel (%p205) target = $region12
      $region11: #{simple_reid_forward.1} parent=5 // pred_region
        %s209 = ssub.s32 %s19, 1
        // Predicated region
        $region13: #{simple_reid_forward.1} parent=11 // pred_check
          %p210 = pneg %p80
        $region14: #{simple_reid_forward.1} parent=11 // pred_check_branch
          %212 = sbr.rel (%p210) target = $region16
        $region15: #{simple_reid_forward.1} parent=11 // pred_region
          _
        $region16: #{simple_reid_forward.1} parent=11 // pred_fallthru
          _
        // Predicated region
        $region17: #{simple_reid_forward.1} parent=11 // pred_check
          %p213 = pneg %p101
        $region18: #{simple_reid_forward.1} parent=11 // pred_check_branch
          %215 = sbr.rel (%p213) target = $region20
        $region19: #{simple_reid_forward.1} parent=11 // pred_region
          _
        $region20: #{simple_reid_forward.1} parent=11 // pred_fallthru
          _
        // Predicated region
        $region21: #{simple_reid_forward.1} parent=11 // pred_check
          %p216 = pneg %p122
        $region22: #{simple_reid_forward.1} parent=11 // pred_check_branch
          %218 = sbr.rel (%p216) target = $region24
        $region23: #{simple_reid_forward.1} parent=11 // pred_region
          _
        $region24: #{simple_reid_forward.1} parent=11 // pred_fallthru
          _
        // Predicated region
        $region25: #{simple_reid_forward.1} parent=11 // pred_check
          %p219 = pneg %p143
        $region26: #{simple_reid_forward.1} parent=11 // pred_check_branch
          %221 = sbr.rel (%p219) target = $region28
        $region27: #{simple_reid_forward.1} parent=11 // pred_region
          _
        $region28: #{simple_reid_forward.1} parent=11 // pred_fallthru
          _
      $region12: #{simple_reid_forward.1} parent=5 // pred_fallthru
        _
      %p222 = scmp.lt.s32.totalorder %s19, 2
      // Predicated region
      $region29: #{simple_reid_forward.1} parent=5 // pred_check
        %p223 = pneg %p222
      $region30: #{simple_reid_forward.1} parent=5 // pred_check_branch
        %225 = sbr.rel (%p223) target = $region32
      $region31: #{simple_reid_forward.1} parent=5 // pred_region
        // Predicated region
        $region33: #{simple_reid_forward.1} parent=31 // pred_check
          %p226 = pneg %p53
        $region34: #{simple_reid_forward.1} parent=31 // pred_check_branch
          %228 = sbr.rel (%p226) target = $region36
        $region35: #{simple_reid_forward.1} parent=31 // pred_region
          %s229 = smul.u32 32, %s27
          %p230 = scmp.lt.s32.totalorder %s26, 1
          %s231 = scalar_select %p230, %s26, 1
          %p232 = scmp.lt.s32.totalorder %s229, 31
          %s233 = scalar_select %p232, %s229, 31
          %s234 = smul.addr %s231, 32
          %s235 = sadd.s32 %s233, %s234
          %s236 = smul.addr %s235, 8
          %s237 = scalar_lea.vmem %s0, %s236
          %s238 = smul.u32 32, %s27
        $region36: #{simple_reid_forward.1} parent=31 // pred_fallthru
          _
      $region32: #{simple_reid_forward.1} parent=5 // pred_fallthru
        _
      %p239 = scmp.le.s32.totalorder 1, %s19
      %p240 = scmp.lt.s32.totalorder %s19, 3
      %p241 = pnand %p239, %p240
      %p242 = pneg %p241
      // Predicated region
      $region37: #{simple_reid_forward.1} parent=5 // pred_check
        _
      $region38: #{simple_reid_forward.1} parent=5 // pred_check_branch
        %244 = sbr.rel (%p241) target = $region40
      $region39: #{simple_reid_forward.1} parent=5 // pred_region
        %s245 = ssub.s32 %s19, 1
        %s246 = smul.u32 32, %s29
        %p247 = scmp.lt.s32.totalorder %s28, 1
        %s248 = scalar_select %p247, %s28, 1
        %p249 = scmp.lt.s32.totalorder %s246, 31
        %s250 = scalar_select %p249, %s246, 31
        %s251 = smul.addr %s248, 32
        %s252 = sadd.s32 %s250, %s251
        %s253 = smul.addr %s252, 8
        %s254 = scalar_lea.vmem %s0, %s253
        %p255 = pneg %p59
        %p256 = pneg %p56
        %p257 = pneg %p80
        %p258 = pneg %p77
        %p259 = pneg %p101
        %p260 = pneg %p98
        %p261 = pneg %p122
        %p262 = pneg %p119
        %p263 = pneg %p143
        %p264 = pneg %p140
        %p265 = pneg %p169
        %p266 = pneg %p166
        %s267 = sand.u32 %s156, 1
        %s268 = scalar_lea.sflag [#allocation4], %s267
        %s269 = sand.u32 %s156, 1
        %s270 = scalar_lea.vmem [#allocation3], %s269
        %p271 = pneg %p195
        %p272 = pneg %p192
        %s273 = sand.u32 %s182, 1
        %s274 = scalar_lea.sflag [#allocation6], %s273
        %s275 = sand.u32 %s182, 1
        %s276 = scalar_lea.vmem [#allocation5], %s275
        %s277 = smul.u32 32, %s29
        %p278 = scmp.lt.s32.totalorder %s28, 1
        %s279 = scalar_select %p278, %s28, 1
        %p280 = scmp.lt.s32.totalorder %s277, 31
        %s281 = scalar_select %p280, %s277, 31
        %s282 = smul.addr %s279, 32
        %s283 = sadd.s32 %s281, %s282
        %s284 = smul.addr %s283, 8
        %s285 = scalar_lea.vmem %s0, %s284
        %s286 = smul.u32 32, %s29
        %p287 = scmp.eq.s32.totalorder %s29, 0
        // Predicated region
        $region41: #{simple_reid_forward.1} parent=39 // pred_check
          %p288 = pneg %p287
        $region42: #{simple_reid_forward.1} parent=39 // pred_check_branch
          %290 = sbr.rel (%p288) target = $region44
        $region43: #{simple_reid_forward.1} parent=39 // pred_region
          %291 = vst [vmem:[#allocation2] sm:$0x1] 0.0
        $region44: #{simple_reid_forward.1} parent=39 // pred_fallthru
          _
        %v292 = vld [vmem:[%s285] sm:$0xff]
        %v293 = vld [vmem:[%s285 + $0x8] sm:$0xff]
        %v294 = vld [vmem:[%s285 + $0x10] sm:$0xff]
        %v295 = vld [vmem:[%s285 + $0x18] sm:$0xff]
        %v296 = vld [vmem:[%s285 + $0x20] sm:$0xff]
        %v297 = vld [vmem:[%s285 + $0x28] sm:$0xff]
        %v298 = vld [vmem:[%s285 + $0x30] sm:$0xff]
        %v299 = vld [vmem:[%s285 + $0x38] sm:$0xff]
        %v300 = vld [vmem:[%s285 + $0x40] sm:$0xff]
        %v301 = vld [vmem:[%s285 + $0x48] sm:$0xff]
        %v302 = vld [vmem:[%s285 + $0x50] sm:$0xff]
        %v303 = vld [vmem:[%s285 + $0x58] sm:$0xff]
        %v304 = vld [vmem:[%s285 + $0x60] sm:$0xff]
        %v305 = vld [vmem:[%s285 + $0x68] sm:$0xff]
        %v306 = vld [vmem:[%s285 + $0x70] sm:$0xff]
        %v307 = vld [vmem:[%s285 + $0x78] sm:$0xff]
        %v308 = vld [vmem:[%s285 + $0x80] sm:$0xff]
        %v309 = vld [vmem:[%s285 + $0x88] sm:$0xff]
        %v310 = vld [vmem:[%s285 + $0x90] sm:$0xff]
        %v311 = vld [vmem:[%s285 + $0x98] sm:$0xff]
        %v312 = vld [vmem:[%s285 + $0xa0] sm:$0xff]
        %v313 = vld [vmem:[%s285 + $0xa8] sm:$0xff]
        %v314 = vld [vmem:[%s285 + $0xb0] sm:$0xff]
        %v315 = vld [vmem:[%s285 + $0xb8] sm:$0xff]
        %v316 = vld [vmem:[%s285 + $0xc0] sm:$0xff]
        %v317 = vld [vmem:[%s285 + $0xc8] sm:$0xff]
        %v318 = vld [vmem:[%s285 + $0xd0] sm:$0xff]
        %v319 = vld [vmem:[%s285 + $0xd8] sm:$0xff]
        %v320 = vld [vmem:[%s285 + $0xe0] sm:$0xff]
        %v321 = vld [vmem:[%s285 + $0xe8] sm:$0xff]
        %v322 = vld [vmem:[%s285 + $0xf0] sm:$0xff]
        %v323 = vld [vmem:[%s285 + $0xf8] sm:$0xff]
        %v324 = vld [vmem:[%s1] sm:$0xff]
        %v325 = vld [vmem:[%s2] sm:$0x1]
        %v327 = vlaneseq
        %v328 = vshrl.u32 %v327, 7
        %v329 = vsub.s32 0, %v328
        %v330 = vrot.slane %v325, %v329
        %vm332 = vcmask 64512
        %v334 = vsel %vm332, %v292, 0
        %v337 = vsel %vm332, %v293, 0
        %v340 = vsel %vm332, %v294, 0
        %v343 = vsel %vm332, %v295, 0
        %v346 = vsel %vm332, %v296, 0
        %v349 = vsel %vm332, %v297, 0
        %v352 = vsel %vm332, %v298, 0
        %v355 = vsel %vm332, %v299, 0
        %v358 = vsel %vm332, %v300, 0
        %v361 = vsel %vm332, %v301, 0
        %v364 = vsel %vm332, %v302, 0
        %v367 = vsel %vm332, %v303, 0
        %v370 = vsel %vm332, %v304, 0
        %v373 = vsel %vm332, %v305, 0
        %v376 = vsel %vm332, %v306, 0
        %v379 = vsel %vm332, %v307, 0
        %v382 = vsel %vm332, %v308, 0
        %v385 = vsel %vm332, %v309, 0
        %v388 = vsel %vm332, %v310, 0
        %v391 = vsel %vm332, %v311, 0
        %v394 = vsel %vm332, %v312, 0
        %v397 = vsel %vm332, %v313, 0
        %v400 = vsel %vm332, %v314, 0
        %v403 = vsel %vm332, %v315, 0
        %v406 = vsel %vm332, %v316, 0
        %v409 = vsel %vm332, %v317, 0
        %v412 = vsel %vm332, %v318, 0
        %v415 = vsel %vm332, %v319, 0
        %v418 = vsel %vm332, %v320, 0
        %v421 = vsel %vm332, %v321, 0
        %v424 = vsel %vm332, %v322, 0
        %v427 = vsel %vm332, %v323, 0
        %429 = vmatprep.subr.mxu0 0.0
        %430 = vmatpush1.msra.mxu0 %v324
        %431 = vmatprep.subr.mxu0 0.0
        %432 = vmatpush1.msra.mxu0 0.0
        %433 = vmatprep.subr.mxu0 0.0
        %434 = vmatpush1.msra.mxu0 0.0
        %435 = vmatprep.subr.mxu0 0.0
        %436 = vmatpush1.msra.mxu0 0.0
        %437 = vmatprep.subr.mxu0 0.0
        %438 = vmatpush1.msra.mxu0 0.0
        %439 = vmatprep.subr.mxu0 0.0
        %440 = vmatpush1.msra.mxu0 0.0
        %441 = vmatprep.subr.mxu0 0.0
        %442 = vmatpush1.msra.mxu0 0.0
        %443 = vmatprep.subr.mxu0 0.0
        %444 = vmatpush1.msra.mxu0 0.0
        %445 = vmatprep.subr.mxu0 0.0
        %446 = vmatpush1.msra.mxu0 0.0
        %447 = vmatprep.subr.mxu0 0.0
        %448 = vmatpush1.msra.mxu0 0.0
        %449 = vmatprep.subr.mxu0 0.0
        %450 = vmatpush1.msra.mxu0 0.0
        %451 = vmatprep.subr.mxu0 0.0
        %452 = vmatpush1.msra.mxu0 0.0
        %453 = vmatprep.subr.mxu0 0.0
        %454 = vmatpush1.msra.mxu0 0.0
        %455 = vmatprep.subr.mxu0 0.0
        %456 = vmatpush1.msra.mxu0 0.0
        %457 = vmatprep.subr.mxu0 0.0
        %458 = vmatpush1.msra.mxu0 0.0
        %459 = vmatprep.subr.mxu0 0.0
        %460 = vmatpush1.msra.mxu0 0.0
        %461 = vmatprep.subr.mxu0 0.0
        %462 = vmatpush1.msra.mxu0 0.0
        %463 = vmatprep.subr.mxu0 0.0
        %464 = vmatpush1.msra.mxu0 0.0
        %465 = vmatprep.subr.mxu0 0.0
        %466 = vmatpush1.msra.mxu0 0.0
        %467 = vmatprep.subr.mxu0 0.0
        %468 = vmatpush1.msra.mxu0 0.0
        %469 = vmatprep.subr.mxu0 0.0
        %470 = vmatpush1.msra.mxu0 0.0
        %471 = vmatprep.subr.mxu0 0.0
        %472 = vmatpush1.msra.mxu0 0.0
        %473 = vmatprep.subr.mxu0 0.0
        %474 = vmatpush1.msra.mxu0 0.0
        %475 = vmatprep.subr.mxu0 0.0
        %476 = vmatpush1.msra.mxu0 0.0
        %477 = vmatprep.subr.mxu0 0.0
        %478 = vmatpush1.msra.mxu0 0.0
        %479 = vmatprep.subr.mxu0 0.0
        %480 = vmatpush1.msra.mxu0 0.0
        %481 = vmatprep.subr.mxu0 0.0
        %482 = vmatpush1.msra.mxu0 0.0
        %483 = vmatprep.subr.mxu0 0.0
        %484 = vmatpush1.msra.mxu0 0.0
        %485 = vmatprep.subr.mxu0 0.0
        %486 = vmatpush1.msra.mxu0 0.0
        %487 = vmatprep.subr.mxu0 0.0
        %488 = vmatpush1.msra.mxu0 0.0
        %489 = vmatprep.subr.mxu0 0.0
        %490 = vmatpush1.msra.mxu0 0.0
        %491 = vmatprep.subr.mxu0 0.0
        %492 = vmatpush1.msra.mxu0 0.0
        %493 = vmatprep.mubr.f32.mxu0 0.0
        %494 = vmatmul.mubr.f32.gmra.mrb[0].mxu0 %v334
        %v495 = vpop.f32.mrb[0].mxu0
        %v496 = vadd.f32 %v330, %v495
        %v497 = vpop.f32.mrb[0].mxu0
        %498 = vmatprep.mubr.f32.mxu0 0.0
        %499 = vmatmul.mubr.f32.gmra.mrb[0].mxu0 %v337
        %v500 = vpop.f32.mrb[0].mxu0
        %v501 = vadd.f32 %v330, %v500
        %v502 = vpop.f32.mrb[0].mxu0
        %503 = vmatprep.mubr.f32.mxu0 0.0
        %504 = vmatmul.mubr.f32.gmra.mrb[0].mxu0 %v340
        %v505 = vpop.f32.mrb[0].mxu0
        %v506 = vadd.f32 %v330, %v505
        %v507 = vpop.f32.mrb[0].mxu0
        %508 = vmatprep.mubr.f32.mxu0 0.0
        %509 = vmatmul.mubr.f32.gmra.mrb[0].mxu0 %v343
        %v510 = vpop.f32.mrb[0].mxu0
        %v511 = vadd.f32 %v330, %v510
        %v512 = vpop.f32.mrb[0].mxu0
        %513 = vmatprep.mubr.f32.mxu0 0.0
        %514 = vmatmul.mubr.f32.gmra.mrb[0].mxu0 %v346
        %v515 = vpop.f32.mrb[0].mxu0
        %v516 = vadd.f32 %v330, %v515
        %v517 = vpop.f32.mrb[0].mxu0
        %518 = vmatprep.mubr.f32.mxu0 0.0
        %519 = vmatmul.mubr.f32.gmra.mrb[0].mxu0 %v349
        %v520 = vpop.f32.mrb[0].mxu0
        %v521 = vadd.f32 %v330, %v520
        %v522 = vpop.f32.mrb[0].mxu0
        %523 = vmatprep.mubr.f32.mxu0 0.0
        %524 = vmatmul.mubr.f32.gmra.mrb[0].mxu0 %v352
        %v525 = vpop.f32.mrb[0].mxu0
        %v526 = vadd.f32 %v330, %v525
        %v527 = vpop.f32.mrb[0].mxu0
        %528 = vmatprep.mubr.f32.mxu0 0.0
        %529 = vmatmul.mubr.f32.gmra.mrb[0].mxu0 %v355
        %v530 = vpop.f32.mrb[0].mxu0
        %v531 = vadd.f32 %v330, %v530
        %v532 = vpop.f32.mrb[0].mxu0
        %533 = vmatprep.mubr.f32.mxu0 0.0
        %534 = vmatmul.mubr.f32.gmra.mrb[0].mxu0 %v358
        %v535 = vpop.f32.mrb[0].mxu0
        %v536 = vadd.f32 %v330, %v535
        %v537 = vpop.f32.mrb[0].mxu0
        %538 = vmatprep.mubr.f32.mxu0 0.0
        %539 = vmatmul.mubr.f32.gmra.mrb[0].mxu0 %v361
        %v540 = vpop.f32.mrb[0].mxu0
        %v541 = vadd.f32 %v330, %v540
        %v542 = vpop.f32.mrb[0].mxu0
        %543 = vmatprep.mubr.f32.mxu0 0.0
        %544 = vmatmul.mubr.f32.gmra.mrb[0].mxu0 %v364
        %v545 = vpop.f32.mrb[0].mxu0
        %v546 = vadd.f32 %v330, %v545
        %v547 = vpop.f32.mrb[0].mxu0
        %548 = vmatprep.mubr.f32.mxu0 0.0
        %549 = vmatmul.mubr.f32.gmra.mrb[0].mxu0 %v367
        %v550 = vpop.f32.mrb[0].mxu0
        %v551 = vadd.f32 %v330, %v550
        %v552 = vpop.f32.mrb[0].mxu0
        %553 = vmatprep.mubr.f32.mxu0 0.0
        %554 = vmatmul.mubr.f32.gmra.mrb[0].mxu0 %v370
        %v555 = vpop.f32.mrb[0].mxu0
        %v556 = vadd.f32 %v330, %v555
        %v557 = vpop.f32.mrb[0].mxu0
        %558 = vmatprep.mubr.f32.mxu0 0.0
        %559 = vmatmul.mubr.f32.gmra.mrb[0].mxu0 %v373
        %v560 = vpop.f32.mrb[0].mxu0
        %v561 = vadd.f32 %v330, %v560
        %v562 = vpop.f32.mrb[0].mxu0
        %563 = vmatprep.mubr.f32.mxu0 0.0
        %564 = vmatmul.mubr.f32.gmra.mrb[0].mxu0 %v376
        %v565 = vpop.f32.mrb[0].mxu0
        %v566 = vadd.f32 %v330, %v565
        %v567 = vpop.f32.mrb[0].mxu0
        %568 = vmatprep.mubr.f32.mxu0 0.0
        %569 = vmatmul.mubr.f32.gmra.mrb[0].mxu0 %v379
        %v570 = vpop.f32.mrb[0].mxu0
        %v571 = vadd.f32 %v330, %v570
        %v572 = vpop.f32.mrb[0].mxu0
        %573 = vmatprep.mubr.f32.mxu0 0.0
        %574 = vmatmul.mubr.f32.gmra.mrb[0].mxu0 %v382
        %v575 = vpop.f32.mrb[0].mxu0
        %v576 = vadd.f32 %v330, %v575
        %v577 = vpop.f32.mrb[0].mxu0
        %578 = vmatprep.mubr.f32.mxu0 0.0
        %579 = vmatmul.mubr.f32.gmra.mrb[0].mxu0 %v385
        %v580 = vpop.f32.mrb[0].mxu0
        %v581 = vadd.f32 %v330, %v580
        %v582 = vpop.f32.mrb[0].mxu0
        %583 = vmatprep.mubr.f32.mxu0 0.0
        %584 = vmatmul.mubr.f32.gmra.mrb[0].mxu0 %v388
        %v585 = vpop.f32.mrb[0].mxu0
        %v586 = vadd.f32 %v330, %v585
        %v587 = vpop.f32.mrb[0].mxu0
        %588 = vmatprep.mubr.f32.mxu0 0.0
        %589 = vmatmul.mubr.f32.gmra.mrb[0].mxu0 %v391
        %v590 = vpop.f32.mrb[0].mxu0
        %v591 = vadd.f32 %v330, %v590
        %v592 = vpop.f32.mrb[0].mxu0
        %593 = vmatprep.mubr.f32.mxu0 0.0
        %594 = vmatmul.mubr.f32.gmra.mrb[0].mxu0 %v394
        %v595 = vpop.f32.mrb[0].mxu0
        %v596 = vadd.f32 %v330, %v595
        %v597 = vpop.f32.mrb[0].mxu0
        %598 = vmatprep.mubr.f32.mxu0 0.0
        %599 = vmatmul.mubr.f32.gmra.mrb[0].mxu0 %v397
        %v600 = vpop.f32.mrb[0].mxu0
        %v601 = vadd.f32 %v330, %v600
        %v602 = vpop.f32.mrb[0].mxu0
        %603 = vmatprep.mubr.f32.mxu0 0.0
        %604 = vmatmul.mubr.f32.gmra.mrb[0].mxu0 %v400
        %v605 = vpop.f32.mrb[0].mxu0
        %v606 = vadd.f32 %v330, %v605
        %v607 = vpop.f32.mrb[0].mxu0
        %608 = vmatprep.mubr.f32.mxu0 0.0
        %609 = vmatmul.mubr.f32.gmra.mrb[0].mxu0 %v403
        %v610 = vpop.f32.mrb[0].mxu0
        %v611 = vadd.f32 %v330, %v610
        %v612 = vpop.f32.mrb[0].mxu0
        %613 = vmatprep.mubr.f32.mxu0 0.0
        %614 = vmatmul.mubr.f32.gmra.mrb[0].mxu0 %v406
        %v615 = vpop.f32.mrb[0].mxu0
        %v616 = vadd.f32 %v330, %v615
        %v617 = vpop.f32.mrb[0].mxu0
        %618 = vmatprep.mubr.f32.mxu0 0.0
        %619 = vmatmul.mubr.f32.gmra.mrb[0].mxu0 %v409
        %v620 = vpop.f32.mrb[0].mxu0
        %v621 = vadd.f32 %v330, %v620
        %v622 = vpop.f32.mrb[0].mxu0
        %623 = vmatprep.mubr.f32.mxu0 0.0
        %624 = vmatmul.mubr.f32.gmra.mrb[0].mxu0 %v412
        %v625 = vpop.f32.mrb[0].mxu0
        %v626 = vadd.f32 %v330, %v625
        %v627 = vpop.f32.mrb[0].mxu0
        %628 = vmatprep.mubr.f32.mxu0 0.0
        %629 = vmatmul.mubr.f32.gmra.mrb[0].mxu0 %v415
        %v630 = vpop.f32.mrb[0].mxu0
        %v631 = vadd.f32 %v330, %v630
        %v632 = vpop.f32.mrb[0].mxu0
        %633 = vmatprep.mubr.f32.mxu0 0.0
        %634 = vmatmul.mubr.f32.gmra.mrb[0].mxu0 %v418
        %v635 = vpop.f32.mrb[0].mxu0
        %v636 = vadd.f32 %v330, %v635
        %v637 = vpop.f32.mrb[0].mxu0
        %638 = vmatprep.mubr.f32.mxu0 0.0
        %639 = vmatmul.mubr.f32.gmra.mrb[0].mxu0 %v421
        %v640 = vpop.f32.mrb[0].mxu0
        %v641 = vadd.f32 %v330, %v640
        %v642 = vpop.f32.mrb[0].mxu0
        %643 = vmatprep.mubr.f32.mxu0 0.0
        %644 = vmatmul.mubr.f32.gmra.mrb[0].mxu0 %v424
        %v645 = vpop.f32.mrb[0].mxu0
        %v646 = vadd.f32 %v330, %v645
        %v647 = vpop.f32.mrb[0].mxu0
        %648 = vmatprep.mubr.f32.mxu0 0.0
        %649 = vmatmul.mubr.f32.gmra.mrb[0].mxu0 %v427
        %v650 = vpop.f32.mrb[0].mxu0
        %v651 = vadd.f32 %v330, %v650
        %v652 = vpop.f32.mrb[0].mxu0
        %653 = vdwg.mxu0
        %v654 = vmax.f32 %v496, 0.0
        %v655 = vmax.f32 %v501, 0.0
        %v656 = vmax.f32 %v506, 0.0
        %v657 = vmax.f32 %v511, 0.0
        %v658 = vmax.f32 %v516, 0.0
        %v659 = vmax.f32 %v521, 0.0
        %v660 = vmax.f32 %v526, 0.0
        %v661 = vmax.f32 %v531, 0.0
        %v662 = vmax.f32 %v536, 0.0
        %v663 = vmax.f32 %v541, 0.0
        %v664 = vmax.f32 %v546, 0.0
        %v665 = vmax.f32 %v551, 0.0
        %v666 = vmax.f32 %v556, 0.0
        %v667 = vmax.f32 %v561, 0.0
        %v668 = vmax.f32 %v566, 0.0
        %v669 = vmax.f32 %v571, 0.0
        %v670 = vmax.f32 %v576, 0.0
        %v671 = vmax.f32 %v581, 0.0
        %v672 = vmax.f32 %v586, 0.0
        %v673 = vmax.f32 %v591, 0.0
        %v674 = vmax.f32 %v596, 0.0
        %v675 = vmax.f32 %v601, 0.0
        %v676 = vmax.f32 %v606, 0.0
        %v677 = vmax.f32 %v611, 0.0
        %v678 = vmax.f32 %v616, 0.0
        %v679 = vmax.f32 %v621, 0.0
        %v680 = vmax.f32 %v626, 0.0
        %v681 = vmax.f32 %v631, 0.0
        %v682 = vmax.f32 %v636, 0.0
        %v683 = vmax.f32 %v641, 0.0
        %v684 = vmax.f32 %v646, 0.0
        %v685 = vmax.f32 %v651, 0.0
        %v686 = vld [vmem:[#allocation2] sm:$0x1]
        %v687 = vadd.f32 %v654, %v655
        %v688 = vadd.f32 %v687, %v656
        %v689 = vadd.f32 %v688, %v657
        %v690 = vadd.f32 %v689, %v658
        %v691 = vadd.f32 %v690, %v659
        %v692 = vadd.f32 %v691, %v660
        %v693 = vadd.f32 %v692, %v661
        %v694 = vadd.f32 %v693, %v662
        %v695 = vadd.f32 %v694, %v663
        %v696 = vadd.f32 %v695, %v664
        %v697 = vadd.f32 %v696, %v665
        %v698 = vadd.f32 %v697, %v666
        %v699 = vadd.f32 %v698, %v667
        %v700 = vadd.f32 %v699, %v668
        %v701 = vadd.f32 %v700, %v669
        %v702 = vadd.f32 %v701, %v670
        %v703 = vadd.f32 %v702, %v671
        %v704 = vadd.f32 %v703, %v672
        %v705 = vadd.f32 %v704, %v673
        %v706 = vadd.f32 %v705, %v674
        %v707 = vadd.f32 %v706, %v675
        %v708 = vadd.f32 %v707, %v676
        %v709 = vadd.f32 %v708, %v677
        %v710 = vadd.f32 %v709, %v678
        %v711 = vadd.f32 %v710, %v679
        %v712 = vadd.f32 %v711, %v680
        %v713 = vadd.f32 %v712, %v681
        %v714 = vadd.f32 %v713, %v682
        %v715 = vadd.f32 %v714, %v683
        %v716 = vadd.f32 %v715, %v684
        %v717 = vadd.f32 %v716, %v685
        %v718 = vrot.slane %v717, 4
        %v719 = vadd.f32 %v717, %v718
        %v720 = vrot.slane %v719, 2
        %v721 = vadd.f32 %v719, %v720
        %v722 = vrot.slane %v721, 1
        %v723 = vadd.f32 %v721, %v722
        %v724 = vadd.f32 %v686, %v723
        %725 = vst [vmem:[#allocation2] sm:$0x1] %v724
        // Predicated region
        $region45: #{simple_reid_forward.1} parent=39 // pred_check
          %p726 = pneg %p287
        $region46: #{simple_reid_forward.1} parent=39 // pred_check_branch
          %728 = sbr.rel (%p726) target = $region48
        $region47: #{simple_reid_forward.1} parent=39 // pred_region
          %v729 = vld [vmem:[#allocation2] sm:$0x1]
          %v730 = vmul.f32 %v729, 0.00390625
          %v731 = vmul.f32 %v730, %v730
          %vm732 = vcmask 1040384
          %v733 = vsel %vm732, %v731, 0.0
          %734 = vadd.xlane.f32.xlu0 %v733
          %v735 = vpop.xlane.xlu0 %734
          %v736 = vmax.f32 %v735, 1e-24
          %v737 = vrsqrt.pop %v736
          %v738 = vmul.f32 %v730, %v737
          %739 = vst [vmem:[%s276] sm:$0x1] %v738
          %v740 = vld [vmem:[%s3] sm:$0xff]
          %v741 = vld [vmem:[%s3 + $0x8] sm:$0xff]
          %v742 = vld [vmem:[%s3 + $0x10] sm:$0xff]
          %v743 = vld [vmem:[%s3 + $0x18] sm:$0xff]
          %v744 = vld [vmem:[%s3 + $0x20] sm:$0xff]
          %v745 = vld [vmem:[%s3 + $0x28] sm:$0xff]
          %v746 = vld [vmem:[%s3 + $0x30] sm:$0xff]
          %v747 = vld [vmem:[%s3 + $0x38] sm:$0xff]
          %v748 = vld [vmem:[%s3 + $0x40] sm:$0xff]
          %v749 = vld [vmem:[%s3 + $0x48] sm:$0xff]
          %v750 = vld [vmem:[%s3 + $0x50] sm:$0xff]
          %v751 = vld [vmem:[%s3 + $0x58] sm:$0xff]
          %v752 = vld [vmem:[%s3 + $0x60] sm:$0xff]
          %v753 = vld [vmem:[%s3 + $0x68] sm:$0xff]
          %v754 = vld [vmem:[%s3 + $0x70] sm:$0xff]
          %v755 = vld [vmem:[%s3 + $0x78] sm:$0xff]
          %v756 = vld [vmem:[%s4] sm:$0x1]
          %757 = vmatprep.subr.mxu0 0.0
          %758 = vmatpush1.msra.mxu0 %v740
          %759 = vmatprep.subr.mxu0 0.0
          %760 = vmatpush1.msra.mxu0 %v741
          %761 = vmatprep.subr.mxu0 0.0
          %762 = vmatpush1.msra.mxu0 %v742
          %763 = vmatprep.subr.mxu0 0.0
          %764 = vmatpush1.msra.mxu0 %v743
          %765 = vmatprep.subr.mxu0 0.0
          %766 = vmatpush1.msra.mxu0 %v744
          %767 = vmatprep.subr.mxu0 0.0
          %768 = vmatpush1.msra.mxu0 %v745
          %769 = vmatprep.subr.mxu0 0.0
          %770 = vmatpush1.msra.mxu0 %v746
          %771 = vmatprep.subr.mxu0 0.0
          %772 = vmatpush1.msra.mxu0 %v747
          %773 = vmatprep.subr.mxu0 0.0
          %774 = vmatpush1.msra.mxu0 %v748
          %775 = vmatprep.subr.mxu0 0.0
          %776 = vmatpush1.msra.mxu0 %v749
          %777 = vmatprep.subr.mxu0 0.0
          %778 = vmatpush1.msra.mxu0 %v750
          %779 = vmatprep.subr.mxu0 0.0
          %780 = vmatpush1.msra.mxu0 %v751
          %781 = vmatprep.subr.mxu0 0.0
          %782 = vmatpush1.msra.mxu0 %v752
          %783 = vmatprep.subr.mxu0 0.0
          %784 = vmatpush1.msra.mxu0 %v753
          %785 = vmatprep.subr.mxu0 0.0
          %786 = vmatpush1.msra.mxu0 %v754
          %787 = vmatprep.subr.mxu0 0.0
          %788 = vmatpush1.msra.mxu0 %v755
          %789 = vmatprep.subr.mxu0 0.0
          %790 = vmatpush1.msra.mxu0 0.0
          %791 = vmatprep.subr.mxu0 0.0
          %792 = vmatpush1.msra.mxu0 0.0
          %793 = vmatprep.subr.mxu0 0.0
          %794 = vmatpush1.msra.mxu0 0.0
          %795 = vmatprep.subr.mxu0 0.0
          %796 = vmatpush1.msra.mxu0 0.0
          %797 = vmatprep.subr.mxu0 0.0
          %798 = vmatpush1.msra.mxu0 0.0
          %799 = vmatprep.subr.mxu0 0.0
          %800 = vmatpush1.msra.mxu0 0.0
          %801 = vmatprep.subr.mxu0 0.0
          %802 = vmatpush1.msra.mxu0 0.0
          %803 = vmatprep.subr.mxu0 0.0
          %804 = vmatpush1.msra.mxu0 0.0
          %805 = vmatprep.subr.mxu0 0.0
          %806 = vmatpush1.msra.mxu0 0.0
          %807 = vmatprep.subr.mxu0 0.0
          %808 = vmatpush1.msra.mxu0 0.0
          %809 = vmatprep.subr.mxu0 0.0
          %810 = vmatpush1.msra.mxu0 0.0
          %811 = vmatprep.subr.mxu0 0.0
          %812 = vmatpush1.msra.mxu0 0.0
          %813 = vmatprep.subr.mxu0 0.0
          %814 = vmatpush1.msra.mxu0 0.0
          %815 = vmatprep.subr.mxu0 0.0
          %816 = vmatpush1.msra.mxu0 0.0
          %817 = vmatprep.subr.mxu0 0.0
          %818 = vmatpush1.msra.mxu0 0.0
          %819 = vmatprep.subr.mxu0 0.0
          %820 = vmatpush1.msra.mxu0 0.0
          %821 = vmatprep.mubr.f32.mxu0 0.0
          %822 = vmatmul.mubr.f32.gmra.mrb[0].mxu0 %v738
          %v823 = vpop.f32.mrb[0].mxu0
          %v824 = vadd.f32 %v756, %v823
          %v825 = vpop.f32.mrb[0].mxu0
          %826 = vdwg.mxu0
          %827 = vst [vmem:[%s270] sm:$0x1] %v824
        $region48: #{simple_reid_forward.1} parent=39 // pred_fallthru
          _
        %s828 = sand.u32 %s156, 1
        %s829 = scalar_lea.sflag [#allocation4], %s828
        %s830 = sand.u32 %s156, 1
        %s831 = scalar_lea.vmem [#allocation3], %s830
        %s832 = sand.u32 %s182, 1
        %s833 = scalar_lea.sflag [#allocation6], %s832
        %s834 = sand.u32 %s182, 1
        %s835 = scalar_lea.vmem [#allocation5], %s834
        // Predicated region
        $region49: #{simple_reid_forward.1} parent=39 // pred_check
          %p836 = pneg %p166
        $region50: #{simple_reid_forward.1} parent=39 // pred_check_branch
          %838 = sbr.rel (%p836) target = $region52
        $region51: #{simple_reid_forward.1} parent=39 // pred_region
          %s840 = ssub.s32 16, 16
          %841 = vsyncadd %s829, %s840
          %s842 = smul.addr %s28, 16
          %s843 = scalar_lea.hbm %s5, %s842
          %s845 = sshll.u32 %s831, 4
          %s846 = int_to_ptr.vmem [resolvable:$true] %s845
          %848 = dma.vmem_to_hbm [thread:$0]  %s846, 16, %s843, %s829
        $region52: #{simple_reid_forward.1} parent=39 // pred_fallthru
          _
        // Predicated region
        $region53: #{simple_reid_forward.1} parent=39 // pred_check
          %p849 = pneg %p192
        $region54: #{simple_reid_forward.1} parent=39 // pred_check_branch
          %851 = sbr.rel (%p849) target = $region56
        $region55: #{simple_reid_forward.1} parent=39 // pred_region
          %s853 = ssub.s32 16, 16
          %854 = vsyncadd %s833, %s853
          %s855 = smul.addr %s28, 16
          %s856 = scalar_lea.hbm %s6, %s855
          %s858 = sshll.u32 %s835, 4
          %s859 = int_to_ptr.vmem [resolvable:$true] %s858
          %861 = dma.vmem_to_hbm [thread:$0]  %s859, 16, %s856, %s833
        $region56: #{simple_reid_forward.1} parent=39 // pred_fallthru
          _
      $region40: #{simple_reid_forward.1} parent=5 // pred_fallthru
        _
      %p862 = scmp.le.s32.totalorder 2, %s19
      // Predicated region
      $region57: #{simple_reid_forward.1} parent=5 // pred_check
        %p863 = pneg %p862
      $region58: #{simple_reid_forward.1} parent=5 // pred_check_branch
        %865 = sbr.rel (%p863) target = $region60
      $region59: #{simple_reid_forward.1} parent=5 // pred_region
        %s866 = ssub.s32 %s19, 2
        // Predicated region
        $region61: #{simple_reid_forward.1} parent=59 // pred_check
          %p867 = pneg %p172
        $region62: #{simple_reid_forward.1} parent=59 // pred_check_branch
          %869 = sbr.rel (%p867) target = $region64
        $region63: #{simple_reid_forward.1} parent=59 // pred_region
          %s870 = sand.u32 %s157, 1
          %s871 = scalar_lea.sflag [#allocation4], %s870
          %s872 = sand.u32 %s157, 1
          %s873 = scalar_lea.vmem [#allocation3], %s872
          %874 = dma.done %s871, 16
        $region64: #{simple_reid_forward.1} parent=59 // pred_fallthru
          _
        // Predicated region
        $region65: #{simple_reid_forward.1} parent=59 // pred_check
          %p875 = pneg %p198
        $region66: #{simple_reid_forward.1} parent=59 // pred_check_branch
          %877 = sbr.rel (%p875) target = $region68
        $region67: #{simple_reid_forward.1} parent=59 // pred_region
          %s878 = sand.u32 %s183, 1
          %s879 = scalar_lea.sflag [#allocation6], %s878
          %s880 = sand.u32 %s183, 1
          %s881 = scalar_lea.vmem [#allocation5], %s880
          %882 = dma.done %s879, 16
        $region68: #{simple_reid_forward.1} parent=59 // pred_fallthru
          _
      $region60: #{simple_reid_forward.1} parent=5 // pred_fallthru
        _
    $region6: #{simple_reid_forward.1} parent=1 // loop_footer
      %s23 = sadd.s32 1, %s19
    $region7: #{simple_reid_forward.1} parent=1 // loop_footer_branch
      %18 = sbr.rel target = $region3
    $region8: #{simple_reid_forward.1} parent=1 // loop_exit
      _
    %883 = vsyncpa [#allocation4], 1
    %s884 = scalar_lea.sflag [#allocation4], 1
    %885 = vsyncpa %s884, 1
    %886 = vsyncpa [#allocation6], 1
    %s887 = scalar_lea.sflag [#allocation6], 1
    %888 = vsyncpa %s887, 1

</llo_original>
